<compile_context>
chip_gen: v5e
topology: v5e:2x2
jax: 0.10.0
libtpu: 0.0.40
codegen_flags: <defaults>
</compile_context>

<pallas_src>
import numpy as np
import jax
import jax.numpy as jnp
from jax import lax
from jax.experimental import pallas as pl
from jax.experimental.pallas import tpu as pltpu


def _make_critic_kernel(B):
    inv_b = 1.0 / float(B)

    def kernel(temp_ref, z_ref, x_ref, wz_ref, bz_ref, wx_ref, bx_ref, out_ref):
        # ---- encoders: two small MXU pushes directly on the raw params ----
        z_emb = jnp.dot(z_ref[...], wz_ref[...],
                        preferred_element_type=jnp.float32) + bz_ref[...]   # (B, E)
        x_emb = jnp.dot(x_ref[...], wx_ref[...],
                        preferred_element_type=jnp.float32) + bx_ref[...]   # (B, E)

        # ---- L2 normalize along feature dim (dim=1): rsqrt -> EUP ----
        z_emb = z_emb * lax.rsqrt(jnp.sum(z_emb * z_emb, axis=1, keepdims=True))
        x_emb = x_emb * lax.rsqrt(jnp.sum(x_emb * x_emb, axis=1, keepdims=True))

        temp = temp_ref[0]
        # ---- similarity logits: temperature * z_emb @ x_emb.T  -> (B, B) ----
        logits = temp * lax.dot_general(
            z_emb, x_emb, (((1,), (1,)), ((), ())),
            preferred_element_type=jnp.float32)

        # Shared diagonal term (diag(L) == diag(L.T)) via a row-wise dot.
        diag = temp * jnp.sum(z_emb * x_emb, axis=1, keepdims=True)         # (B, 1)

        # Row-wise logsumexp (loss1) and column-wise logsumexp (loss2);
        # no transpose of the logits tile.
        m1 = jnp.max(logits, axis=1, keepdims=True)                         # (B, 1)
        lse1 = m1 + jnp.log(jnp.sum(jnp.exp(logits - m1),
                                    axis=1, keepdims=True))                 # (B, 1)
        m2 = jnp.max(logits, axis=0, keepdims=True)                         # (1, B)
        lse2 = m2 + jnp.log(jnp.sum(jnp.exp(logits - m2),
                                    axis=0, keepdims=True))                 # (1, B)

        # mean(lse1 - diag)/2 + mean(lse2 - diag)/2, with the diag sum shared.
        loss = 0.5 * inv_b * (jnp.sum(lse1) + jnp.sum(lse2)
                              - 2.0 * jnp.sum(diag))
        out_ref[0, 0] = loss

    return kernel


def critic_loss(z, x, wz, bz, wx, bx, temperature):
    """Pallas wrapper. z:(B,Dz), x:(B,Dx), wz:(Dz,E), wx:(Dx,E), biases (1,E)."""
    B, _ = z.shape

    temp = jnp.asarray(temperature, jnp.float32).reshape((1,))

    out = pl.pallas_call(
        _make_critic_kernel(B),
        out_shape=jax.ShapeDtypeStruct((1, 1), jnp.float32),
        in_specs=[
            pl.BlockSpec(memory_space=pltpu.MemorySpace.SMEM),   # temperature
            pl.BlockSpec(memory_space=pltpu.MemorySpace.VMEM),   # z
            pl.BlockSpec(memory_space=pltpu.MemorySpace.VMEM),   # x
            pl.BlockSpec(memory_space=pltpu.MemorySpace.VMEM),   # Wz
            pl.BlockSpec(memory_space=pltpu.MemorySpace.VMEM),   # bz
            pl.BlockSpec(memory_space=pltpu.MemorySpace.VMEM),   # Wx
            pl.BlockSpec(memory_space=pltpu.MemorySpace.VMEM),   # bx
        ],
        out_specs=pl.BlockSpec(memory_space=pltpu.MemorySpace.SMEM),
    )(temp, z, x, wz, bz, wx, bx)
    return out[0, 0]


def critic_loss_ref(z, x, wz, bz, wx, bx, temperature):
    """Pure-JAX reference mirroring the PyTorch forward."""
    z_emb = z @ wz + bz
    z_emb = z_emb / jnp.linalg.norm(z_emb, axis=1, keepdims=True)
    x_emb = x @ wx + bx
    x_emb = x_emb / jnp.linalg.norm(x_emb, axis=1, keepdims=True)
    logits1 = temperature * z_emb @ x_emb.T
    labels = jnp.arange(logits1.shape[0])

    def ce(lg):
        lse = jax.nn.logsumexp(lg, axis=1)
        return jnp.mean(lse - lg[jnp.arange(lg.shape[0]), labels])

    return (ce(logits1) + ce(logits1.T)) / 2.0


if __name__ == "__main__":
    B, Dz, Dx, E = 8, 32, 64, 128

    key = jax.random.PRNGKey(0)
    kz, kx, kwz, kwx = jax.random.split(key, 4)

    z = jax.random.normal(kz, (B, Dz), jnp.float32)
    x = jax.random.normal(kx, (B, Dx), jnp.float32)

    # Deterministic synthetic encoder parameters (Linear Dz->E, Dx->E).
    wz = jax.random.normal(kwz, (Dz, E), jnp.float32) * (1.0 / np.sqrt(Dz))
    bz = jnp.zeros((1, E), jnp.float32)
    wx = jax.random.normal(kwx, (Dx, E), jnp.float32) * (1.0 / np.sqrt(Dx))
    bx = jnp.zeros((1, E), jnp.float32)

    # nn.Parameter(torch.ones([]) * np.log(1/0.07)) — used directly (no exp),
    # exactly as in the PyTorch forward.
    temperature = float(np.log(1.0 / 0.07))

    loss = jax.block_until_ready(
        critic_loss(z, x, wz, bz, wx, bx, temperature))
    loss_ref = jax.block_until_ready(
        critic_loss_ref(z, x, wz, bz, wx, bx, temperature))

    assert np.isfinite(float(loss))
    np.testing.assert_allclose(float(loss), float(loss_ref),
                               rtol=1e-5, atol=1e-5)
    print("KERNEL_OK")
</pallas_src>

<mosaic_0001>
module attributes {stable_mosaic.version = 11 : i64} {
  func.func @kernel(%arg0: memref<1xf32, #tpu.memory_space<smem>>, %arg1: memref<8x32xf32, #tpu.memory_space<vmem>>, %arg2: memref<8x64xf32, #tpu.memory_space<vmem>>, %arg3: memref<32x128xf32, #tpu.memory_space<vmem>>, %arg4: memref<1x128xf32, #tpu.memory_space<vmem>>, %arg5: memref<64x128xf32, #tpu.memory_space<vmem>>, %arg6: memref<1x128xf32, #tpu.memory_space<vmem>>, %arg7: memref<1x1xf32, #tpu.memory_space<smem>>) attributes {dimension_semantics = [], scalar_prefetch = 0 : i64, scratch_operands = 0 : i64, tpu.core_type = #tpu.core_type<tc>} {
    %c0 = arith.constant 0 : index
    %c0_0 = arith.constant 0 : index
    %0 = vector.load %arg1[%c0, %c0_0] : memref<8x32xf32, #tpu.memory_space<vmem>>, vector<8x32xf32>
    %c0_1 = arith.constant 0 : index
    %c0_2 = arith.constant 0 : index
    %1 = vector.load %arg3[%c0_1, %c0_2] : memref<32x128xf32, #tpu.memory_space<vmem>>, vector<32x128xf32>
    %cst = arith.constant dense<0.000000e+00> : vector<8x128xf32>
    %2 = tpu.matmul %0, %1, %cst {dimension_numbers = #tpu.dot_dimension_numbers<[1], [0], [0], [1], [0, 0, 1, 1], [], []>} : vector<8x32xf32>, vector<32x128xf32>, vector<8x128xf32> -> vector<8x128xf32>
    %c0_3 = arith.constant 0 : index
    %c0_4 = arith.constant 0 : index
    %3 = vector.load %arg4[%c0_3, %c0_4] : memref<1x128xf32, #tpu.memory_space<vmem>>, vector<1x128xf32>
    %4 = vector.broadcast %3 : vector<1x128xf32> to vector<8x128xf32>
    %5 = arith.addf %2, %4 : vector<8x128xf32>
    %c0_5 = arith.constant 0 : index
    %c0_6 = arith.constant 0 : index
    %6 = vector.load %arg2[%c0_5, %c0_6] : memref<8x64xf32, #tpu.memory_space<vmem>>, vector<8x64xf32>
    %c0_7 = arith.constant 0 : index
    %c0_8 = arith.constant 0 : index
    %7 = vector.load %arg5[%c0_7, %c0_8] : memref<64x128xf32, #tpu.memory_space<vmem>>, vector<64x128xf32>
    %cst_9 = arith.constant dense<0.000000e+00> : vector<8x128xf32>
    %8 = tpu.matmul %6, %7, %cst_9 {dimension_numbers = #tpu.dot_dimension_numbers<[1], [0], [0], [1], [0, 0, 1, 1], [], []>} : vector<8x64xf32>, vector<64x128xf32>, vector<8x128xf32> -> vector<8x128xf32>
    %c0_10 = arith.constant 0 : index
    %c0_11 = arith.constant 0 : index
    %9 = vector.load %arg6[%c0_10, %c0_11] : memref<1x128xf32, #tpu.memory_space<vmem>>, vector<1x128xf32>
    %10 = vector.broadcast %9 : vector<1x128xf32> to vector<8x128xf32>
    %11 = arith.addf %8, %10 : vector<8x128xf32>
    %12 = arith.mulf %5, %5 : vector<8x128xf32>
    %cst_12 = arith.constant dense<0.000000e+00> : vector<8xf32>
    %13 = vector.multi_reduction <add>, %12, %cst_12 [1] : vector<8x128xf32> to vector<8xf32>
    %14 = vector.shape_cast %13 : vector<8xf32> to vector<8x1xf32>
    %15 = math.rsqrt %14 : vector<8x1xf32>
    %16 = vector.broadcast %15 : vector<8x1xf32> to vector<8x128xf32>
    %17 = arith.mulf %5, %16 : vector<8x128xf32>
    %18 = arith.mulf %11, %11 : vector<8x128xf32>
    %cst_13 = arith.constant dense<0.000000e+00> : vector<8xf32>
    %19 = vector.multi_reduction <add>, %18, %cst_13 [1] : vector<8x128xf32> to vector<8xf32>
    %20 = vector.shape_cast %19 : vector<8xf32> to vector<8x1xf32>
    %21 = math.rsqrt %20 : vector<8x1xf32>
    %22 = vector.broadcast %21 : vector<8x1xf32> to vector<8x128xf32>
    %23 = arith.mulf %11, %22 : vector<8x128xf32>
    %c0_14 = arith.constant 0 : index
    %24 = memref.load %arg0[%c0_14] : memref<1xf32, #tpu.memory_space<smem>>
    %cst_15 = arith.constant dense<0.000000e+00> : vector<8x8xf32>
    %25 = tpu.matmul %17, %23, %cst_15 {dimension_numbers = #tpu.dot_dimension_numbers<[1], [1], [0], [0], [0, 0, 1, 0], [], []>} : vector<8x128xf32>, vector<8x128xf32>, vector<8x8xf32> -> vector<8x8xf32>
    %26 = vector.broadcast %24 : f32 to vector<8x8xf32>
    %27 = arith.mulf %26, %25 : vector<8x8xf32>
    %28 = arith.mulf %17, %23 : vector<8x128xf32>
    %cst_16 = arith.constant dense<0.000000e+00> : vector<8xf32>
    %29 = vector.multi_reduction <add>, %28, %cst_16 [1] : vector<8x128xf32> to vector<8xf32>
    %30 = vector.shape_cast %29 : vector<8xf32> to vector<8x1xf32>
    %31 = vector.broadcast %24 : f32 to vector<8x1xf32>
    %32 = arith.mulf %31, %30 : vector<8x1xf32>
    %cst_17 = arith.constant dense<0xFF800000> : vector<8xf32>
    %33 = vector.multi_reduction <maximumf>, %27, %cst_17 [1] : vector<8x8xf32> to vector<8xf32>
    %34 = vector.shape_cast %33 : vector<8xf32> to vector<8x1xf32>
    %35 = vector.broadcast %34 : vector<8x1xf32> to vector<8x8xf32>
    %36 = arith.subf %27, %35 : vector<8x8xf32>
    %37 = math.exp %36 : vector<8x8xf32>
    %cst_18 = arith.constant dense<0.000000e+00> : vector<8xf32>
    %38 = vector.multi_reduction <add>, %37, %cst_18 [1] : vector<8x8xf32> to vector<8xf32>
    %39 = vector.shape_cast %38 : vector<8xf32> to vector<8x1xf32>
    %40 = math.log %39 : vector<8x1xf32>
    %41 = arith.addf %34, %40 : vector<8x1xf32>
    %cst_19 = arith.constant dense<0xFF800000> : vector<8xf32>
    %42 = vector.multi_reduction <maximumf>, %27, %cst_19 [0] : vector<8x8xf32> to vector<8xf32>
    %43 = vector.shape_cast %42 : vector<8xf32> to vector<1x8xf32>
    %44 = vector.broadcast %43 : vector<1x8xf32> to vector<8x8xf32>
    %45 = arith.subf %27, %44 : vector<8x8xf32>
    %46 = math.exp %45 : vector<8x8xf32>
    %cst_20 = arith.constant dense<0.000000e+00> : vector<8xf32>
    %47 = vector.multi_reduction <add>, %46, %cst_20 [0] : vector<8x8xf32> to vector<8xf32>
    %48 = vector.shape_cast %47 : vector<8xf32> to vector<1x8xf32>
    %49 = math.log %48 : vector<1x8xf32>
    %50 = arith.addf %43, %49 : vector<1x8xf32>
    %51 = vector.shape_cast %41 : vector<8x1xf32> to vector<1x8x1xf32>
    %cst_21 = arith.constant dense<0.000000e+00> : vector<1xf32>
    %52 = vector.multi_reduction <add>, %51, %cst_21 [1, 2] : vector<1x8x1xf32> to vector<1xf32>
    %53 = vector.shape_cast %52 : vector<1xf32> to vector<1x1x1xf32>
    %54 = vector.extract %53[0, 0, 0] : f32 from vector<1x1x1xf32>
    %55 = vector.shape_cast %50 : vector<1x8xf32> to vector<1x1x8xf32>
    %cst_22 = arith.constant dense<0.000000e+00> : vector<1xf32>
    %56 = vector.multi_reduction <add>, %55, %cst_22 [1, 2] : vector<1x1x8xf32> to vector<1xf32>
    %57 = vector.shape_cast %56 : vector<1xf32> to vector<1x1x1xf32>
    %58 = vector.extract %57[0, 0, 0] : f32 from vector<1x1x1xf32>
    %59 = arith.addf %54, %58 : f32
    %60 = vector.shape_cast %32 : vector<8x1xf32> to vector<1x8x1xf32>
    %cst_23 = arith.constant dense<0.000000e+00> : vector<1xf32>
    %61 = vector.multi_reduction <add>, %60, %cst_23 [1, 2] : vector<1x8x1xf32> to vector<1xf32>
    %62 = vector.shape_cast %61 : vector<1xf32> to vector<1x1x1xf32>
    %63 = vector.extract %62[0, 0, 0] : f32 from vector<1x1x1xf32>
    %cst_24 = arith.constant 2.000000e+00 : f32
    %64 = arith.mulf %cst_24, %63 : f32
    %65 = arith.subf %59, %64 : f32
    %cst_25 = arith.constant 6.250000e-02 : f32
    %66 = arith.mulf %cst_25, %65 : f32
    %c0_26 = arith.constant 0 : index
    %c0_27 = arith.constant 0 : index
    %67 = memref.load %arg7[%c0_26, %c0_27] : memref<1x1xf32, #tpu.memory_space<smem>>
    memref.store %66, %arg7[%c0_26, %c0_27] : memref<1x1xf32, #tpu.memory_space<smem>>
    return
  }
}

</mosaic_0001>

<llo_original>
// kernel: tpu_custom_call.1
$region0: #{tpu_custom_call.1}
  #allocation0 [shape = 'u32[]', space=smem, size = 0x4, offset = 0x4, fixed_abs, tag = 'smem constant byte address 0x4 - core index']
  #allocation1 [shape = 'u32[72,128]{1,0:T(1,128)}', space=vmem, size = 0x9000, scoped, tag = 'internal scratch']
  #allocation2 [shape = 'f32[1]{0:T(128)S(6)}', space=smem, size = 0x200, scoped, tag = 'scoped memory for tpu_custom_call.1']
  %s0 = inlined_call_operand.<no memory space> [shape: f32[1], index: 0, kind: input, shape index: {}]
  %s1 = inlined_call_operand.hbm [shape: f32[8,32], index: 1, kind: input, shape index: {}]
  %s2 = inlined_call_operand.hbm [shape: f32[8,64], index: 2, kind: input, shape index: {}]
  %s3 = inlined_call_operand.hbm [shape: f32[32,128], index: 3, kind: input, shape index: {}]
  %s4 = inlined_call_operand.vmem [shape: f32[1,128], index: 4, kind: input, shape index: {}]
  %s5 = inlined_call_operand.hbm [shape: f32[64,128], index: 5, kind: input, shape index: {}]
  %s6 = inlined_call_operand.vmem [shape: f32[1,128], index: 6, kind: input, shape index: {}]
  %s7 = inlined_call_operand.hbm [shape: f32[1,1], index: 7, kind: output, shape index: {}]
  %s8 = sld [smem:[#allocation0]]
  $region54: #{tpu_custom_call.1} parent=0
    _
  %s10 = ssub.s32 1, %s8
  %s11 = scalar_select 0, %s10, %s8
  %12 = sst [smem:[#allocation2]] %s0
  $region1: #{tpu_custom_call.1} parent=0
    #allocation3 [shape = 'u8[4096]{0}', space=vmem, size = 0x1000, scoped, tag = 'input window, operand 1, single buffered']
    #allocation4 [shape = 's32[1]{0}', space=sflag, size = 0x4, scoped, tag = 'scoped memory for tpu_custom_call.1']
    #allocation5 [shape = 's32[1]{0}', space=sflag, size = 0x4, scoped, tag = 'scoped memory for tpu_custom_call.1']
    #allocation6 [shape = 'u8[4096]{0}', space=vmem, size = 0x1000, scoped, tag = 'input window, operand 2, single buffered']
    #allocation7 [shape = 's32[1]{0}', space=sflag, size = 0x4, scoped, tag = 'scoped memory for tpu_custom_call.1']
    #allocation8 [shape = 'u8[16384]{0}', space=vmem, size = 0x4000, scoped, tag = 'input window, operand 3, single buffered']
    #allocation9 [shape = 'u8[32768]{0}', space=vmem, size = 0x8000, scoped, tag = 'input window, operand 5, single buffered']
    #allocation10 [shape = 's32[1]{0}', space=sflag, size = 0x4, scoped, tag = 'scoped memory for tpu_custom_call.1']
    #allocation11 [shape = 'u8[512]{0}', space=smem, size = 0x200, scoped, tag = 'output window, operand 0, single buffered']
    %13 = vsyncpa [#allocation4], 0
    %14 = vsyncpa [#allocation7], 0
    %15 = vsyncpa [#allocation10], 0
    %16 = vsyncpa [#allocation5], 0
    // Predicated region
    $region2: #{tpu_custom_call.1} parent=1 // pred_check
      _
    $region3: #{tpu_custom_call.1} parent=1 // pred_check_branch
      %18 = sbr.rel (0) target = $region5
    $region4: #{tpu_custom_call.1} parent=1 // pred_region
      _
    $region5: #{tpu_custom_call.1} parent=1 // pred_fallthru
      _
    // Predicated region
    $region6: #{tpu_custom_call.1} parent=1 // pred_check
      _
    $region7: #{tpu_custom_call.1} parent=1 // pred_check_branch
      %20 = sbr.rel (0) target = $region9
    $region8: #{tpu_custom_call.1} parent=1 // pred_region
      %22 = vsyncadd [#allocation4], 0
      %s24 = sshll.u32 %s1, 4
      %s25 = int_to_ptr.hbm [resolvable:$true] %s24
      %s26 = sshll.u32 [#allocation3], 4
      %s27 = int_to_ptr.vmem [resolvable:$true] %s26
      %29 = dma.hbm_to_vmem [thread:$0]  %s25, 128, %s27, [#allocation4]
    $region9: #{tpu_custom_call.1} parent=1 // pred_fallthru
      _
    // Predicated region
    $region10: #{tpu_custom_call.1} parent=1 // pred_check
      _
    $region11: #{tpu_custom_call.1} parent=1 // pred_check_branch
      %31 = sbr.rel (0) target = $region13
    $region12: #{tpu_custom_call.1} parent=1 // pred_region
      %33 = vsyncadd [#allocation7], 0
      %s35 = sshll.u32 %s2, 4
      %s36 = int_to_ptr.hbm [resolvable:$true] %s35
      %s37 = sshll.u32 [#allocation6], 4
      %s38 = int_to_ptr.vmem [resolvable:$true] %s37
      %40 = dma.hbm_to_vmem [thread:$0]  %s36, 128, %s38, [#allocation7]
    $region13: #{tpu_custom_call.1} parent=1 // pred_fallthru
      _
    // Predicated region
    $region14: #{tpu_custom_call.1} parent=1 // pred_check
      _
    $region15: #{tpu_custom_call.1} parent=1 // pred_check_branch
      %42 = sbr.rel (0) target = $region17
    $region16: #{tpu_custom_call.1} parent=1 // pred_region
      %44 = vsyncadd [#allocation7], 0
      %s45 = sshll.u32 %s3, 4
      %s46 = int_to_ptr.hbm [resolvable:$true] %s45
      %s47 = sshll.u32 [#allocation8], 4
      %s48 = int_to_ptr.vmem [resolvable:$true] %s47
      %53 = dma.hbm_to_vmem [thread:$0]  %s46, 512, %s48, [#allocation7], 128, 128, 8
    $region17: #{tpu_custom_call.1} parent=1 // pred_fallthru
      _
    // Predicated region
    $region18: #{tpu_custom_call.1} parent=1 // pred_check
      _
    $region19: #{tpu_custom_call.1} parent=1 // pred_check_branch
      %55 = sbr.rel (0) target = $region21
    $region20: #{tpu_custom_call.1} parent=1 // pred_region
      _
    $region21: #{tpu_custom_call.1} parent=1 // pred_fallthru
      _
    // Predicated region
    $region22: #{tpu_custom_call.1} parent=1 // pred_check
      _
    $region23: #{tpu_custom_call.1} parent=1 // pred_check_branch
      %57 = sbr.rel (0) target = $region25
    $region24: #{tpu_custom_call.1} parent=1 // pred_region
      %59 = vsyncadd [#allocation10], 0
      %s60 = sshll.u32 %s5, 4
      %s61 = int_to_ptr.hbm [resolvable:$true] %s60
      %s62 = sshll.u32 [#allocation9], 4
      %s63 = int_to_ptr.vmem [resolvable:$true] %s62
      %68 = dma.hbm_to_vmem [thread:$0]  %s61, 1024, %s63, [#allocation10], 128, 128, 8
    $region25: #{tpu_custom_call.1} parent=1 // pred_fallthru
      _
    // Predicated region
    $region26: #{tpu_custom_call.1} parent=1 // pred_check
      _
    $region27: #{tpu_custom_call.1} parent=1 // pred_check_branch
      %70 = sbr.rel (0) target = $region29
    $region28: #{tpu_custom_call.1} parent=1 // pred_region
      _
    $region29: #{tpu_custom_call.1} parent=1 // pred_fallthru
      _
    // Predicated region
    $region30: #{tpu_custom_call.1} parent=1 // pred_check
      _
    $region31: #{tpu_custom_call.1} parent=1 // pred_check_branch
      %72 = sbr.rel (0) target = $region33
    $region32: #{tpu_custom_call.1} parent=1 // pred_region
      %74 = dma.done [#allocation4], 128
    $region33: #{tpu_custom_call.1} parent=1 // pred_fallthru
      _
    // Predicated region
    $region34: #{tpu_custom_call.1} parent=1 // pred_check
      _
    $region35: #{tpu_custom_call.1} parent=1 // pred_check_branch
      %76 = sbr.rel (0) target = $region37
    $region36: #{tpu_custom_call.1} parent=1 // pred_region
      %78 = dma.done [#allocation7], 128
    $region37: #{tpu_custom_call.1} parent=1 // pred_fallthru
      _
    // Predicated region
    $region38: #{tpu_custom_call.1} parent=1 // pred_check
      _
    $region39: #{tpu_custom_call.1} parent=1 // pred_check_branch
      %80 = sbr.rel (0) target = $region41
    $region40: #{tpu_custom_call.1} parent=1 // pred_region
      %82 = dma.done [#allocation7], 512
    $region41: #{tpu_custom_call.1} parent=1 // pred_fallthru
      _
    // Predicated region
    $region42: #{tpu_custom_call.1} parent=1 // pred_check
      _
    $region43: #{tpu_custom_call.1} parent=1 // pred_check_branch
      %84 = sbr.rel (0) target = $region45
    $region44: #{tpu_custom_call.1} parent=1 // pred_region
      %86 = dma.done [#allocation10], 1024
    $region45: #{tpu_custom_call.1} parent=1 // pred_fallthru
      _
    %v87 = vld [vmem:[#allocation3] sm:$0xff]
    %v88 = vld [vmem:[#allocation8] sm:$0xff]
    %v89 = vld [vmem:[#allocation8 + $0x8] sm:$0xff]
    %v90 = vld [vmem:[#allocation8 + $0x10] sm:$0xff]
    %v91 = vld [vmem:[#allocation8 + $0x18] sm:$0xff]
    %v92 = vld [vmem:[%s4] sm:$0x1]
    %v94 = vperm.slane %v92, 0
    %vm96 = vcmask 261120
    %v98 = vsel %vm96, %v87, 0
    %100 = vmatpush.msra.mxu0 0.0
    %101 = vmatpush.msra.mxu0 0.0
    %102 = vmatpush.msra.mxu0 0.0
    %103 = vmatpush.msra.mxu0 0.0
    %104 = vmatpush.msra.mxu0 0.0
    %105 = vmatpush.msra.mxu0 0.0
    %106 = vmatpush.msra.mxu0 0.0
    %107 = vmatpush.msra.mxu0 0.0
    %108 = vmatpush.msra.mxu0 0.0
    %109 = vmatpush.msra.mxu0 0.0
    %110 = vmatpush.msra.mxu0 0.0
    %111 = vmatpush.msra.mxu0 0.0
    %112 = vmatpush.msra.mxu0 %v91
    %113 = vmatpush.msra.mxu0 %v90
    %114 = vmatpush.msra.mxu0 %v89
    %115 = vmatpush.msra.mxu0 %v88
    %116 = vmatmul.f32.gmra.mxu0 %v98
    %v117 = vpop.f32.mrf.mxu0
    %v118 = vadd.f32 %v94, %v117
    %119 = vdwg.mxu0
    %v120 = vld [vmem:[#allocation6] sm:$0xff]
    %v121 = vld [vmem:[#allocation9] sm:$0xff]
    %v122 = vld [vmem:[#allocation9 + $0x8] sm:$0xff]
    %v123 = vld [vmem:[#allocation9 + $0x10] sm:$0xff]
    %v124 = vld [vmem:[#allocation9 + $0x18] sm:$0xff]
    %v125 = vld [vmem:[#allocation9 + $0x20] sm:$0xff]
    %v126 = vld [vmem:[#allocation9 + $0x28] sm:$0xff]
    %v127 = vld [vmem:[#allocation9 + $0x30] sm:$0xff]
    %v128 = vld [vmem:[#allocation9 + $0x38] sm:$0xff]
    %v129 = vld [vmem:[%s6] sm:$0x1]
    %v131 = vperm.slane %v129, 0
    %vm133 = vcmask 523264
    %v135 = vsel %vm133, %v120, 0
    %137 = vmatpush.msra.mxu0 0.0
    %138 = vmatpush.msra.mxu0 0.0
    %139 = vmatpush.msra.mxu0 0.0
    %140 = vmatpush.msra.mxu0 0.0
    %141 = vmatpush.msra.mxu0 0.0
    %142 = vmatpush.msra.mxu0 0.0
    %143 = vmatpush.msra.mxu0 0.0
    %144 = vmatpush.msra.mxu0 0.0
    %145 = vmatpush.msra.mxu0 %v128
    %146 = vmatpush.msra.mxu0 %v127
    %147 = vmatpush.msra.mxu0 %v126
    %148 = vmatpush.msra.mxu0 %v125
    %149 = vmatpush.msra.mxu0 %v124
    %150 = vmatpush.msra.mxu0 %v123
    %151 = vmatpush.msra.mxu0 %v122
    %152 = vmatpush.msra.mxu0 %v121
    %153 = vmatmul.f32.gmra.mxu0 %v135
    %v154 = vpop.f32.mrf.mxu0
    %v155 = vadd.f32 %v131, %v154
    %156 = vdwg.mxu0
    %v157 = vmul.f32 %v118, %v118
    %158 = vadd.xlane.f32.xlu0 %v157
    %v159 = vpop.xlane.xlu0 %158
    %v160 = vrsqrt.pop %v159
    %v161 = vmul.f32 %v160, %v159
    %v162 = vmul.f32 %v161, %v160
    %v163 = vmul.f32 0.5, %v162
    %v164 = vsub.f32 1.5, %v163
    %v165 = vmul.f32 %v160, %v164
    %vm166 = vweird.f32 %v159
    %vm167 = vweird.f32 %v160
    %vm168 = vmor %vm166, %vm167
    %v169 = vsel %vm168, %v160, %v165
    %v170 = vmul.f32 %v118, %v169
    %v171 = vmul.f32 %v155, %v155
    %172 = vadd.xlane.f32.xlu0 %v171
    %v173 = vpop.xlane.xlu0 %172
    %v174 = vrsqrt.pop %v173
    %v175 = vmul.f32 %v174, %v173
    %v176 = vmul.f32 %v175, %v174
    %v177 = vmul.f32 0.5, %v176
    %v178 = vsub.f32 1.5, %v177
    %v179 = vmul.f32 %v174, %v178
    %vm180 = vweird.f32 %v173
    %vm181 = vweird.f32 %v174
    %vm182 = vmor %vm180, %vm181
    %v183 = vsel %vm182, %v174, %v179
    %v184 = vmul.f32 %v155, %v183
    %s185 = sld [smem:[#allocation2]]
    %186 = vmatpush.xpose.msra.mxu0 0.0
    %187 = vmatpush.xpose.msra.mxu0 0.0
    %188 = vmatpush.xpose.msra.mxu0 0.0
    %189 = vmatpush.xpose.msra.mxu0 0.0
    %190 = vmatpush.xpose.msra.mxu0 0.0
    %191 = vmatpush.xpose.msra.mxu0 0.0
    %192 = vmatpush.xpose.msra.mxu0 0.0
    %193 = vmatpush.xpose.msra.mxu0 0.0
    %194 = vmatpush.xpose.msra.mxu0 0.0
    %195 = vmatpush.xpose.msra.mxu0 0.0
    %196 = vmatpush.xpose.msra.mxu0 0.0
    %197 = vmatpush.xpose.msra.mxu0 0.0
    %198 = vmatpush.xpose.msra.mxu0 0.0
    %199 = vmatpush.xpose.msra.mxu0 0.0
    %200 = vmatpush.xpose.msra.mxu0 0.0
    %201 = vmatpush.xpose.msra.mxu0 %v184
    %202 = vmatmul.f32.gmra.mxu0 %v170
    %v203 = vpop.f32.mrf.mxu0
    %v204 = vadd.f32 0.0, %v203
    %205 = vdwg.mxu0
    %v206 = vstv %s185
    %v207 = vmul.f32 %v206, %v204
    %v208 = vmul.f32 %v170, %v184
    %209 = vadd.xlane.f32.xlu0 %v208
    %v210 = vpop.xlane.xlu0 %209
    %v211 = vmul.f32 %v206, %v210
    %vm212 = vcmask 64512
    %v213 = vsel %vm212, %v207, -inf
    %214 = vmax.xlane.f32.xlu0 %v213
    %v215 = vpop.xlane.xlu0 %214
    %v216 = vsub.f32 %v207, %v215
    %v217 = vmul.f32 %v216, 1.442695
    %v218 = vpow.pop %v217
    %v219 = vsel %vm212, %v218, 0.0
    %220 = vadd.xlane.f32.xlu0 %v219
    %v221 = vpop.xlane.xlu0 %220
    %v222 = vlog2.pop %v221
    %v223 = vmul.f32 %v222, 0.6931472
    %v224 = vadd.f32 %v215, %v223
    %v225 = vrot.slane %v213, 4
    %v226 = vmax.f32 %v213, %v225
    %v227 = vrot.slane %v226, 2
    %v228 = vmax.f32 %v226, %v227
    %v229 = vrot.slane %v228, 1
    %v230 = vmax.f32 %v228, %v229
    %v231 = vsub.f32 %v207, %v230
    %v232 = vmul.f32 %v231, 1.442695
    %v233 = vpow.pop %v232
    %v234 = vsel %vm212, %v233, 0.0
    %v235 = vrot.slane %v234, 4
    %v236 = vadd.f32 %v234, %v235
    %v237 = vrot.slane %v236, 2
    %v238 = vadd.f32 %v236, %v237
    %v239 = vrot.slane %v238, 1
    %v240 = vadd.f32 %v238, %v239
    %v241 = vlog2.pop %v240
    %v242 = vmul.f32 %v241, 0.6931472
    %v243 = vadd.f32 %v230, %v242
    %vm244 = vcmask 7168
    %v245 = vsel %vm244, %v224, 0.0
    %246 = vadd.xlane.f32.xlu0 %v245
    %v247 = vpop.xlane.xlu0 %246
    %v248 = vrot.slane %v247, 4
    %v249 = vadd.f32 %v247, %v248
    %v250 = vrot.slane %v249, 2
    %v251 = vadd.f32 %v249, %v250
    %v252 = vrot.slane %v251, 1
    %v253 = vadd.f32 %v251, %v252
    %s254 = vtos %v253
    %vm255 = vcmask 57344
    %v256 = vsel %vm255, %v243, 0.0
    %257 = vadd.xlane.f32.xlu0 %v256
    %v258 = vpop.xlane.xlu0 %257
    %v259 = vrot.slane %v258, 4
    %v260 = vadd.f32 %v258, %v259
    %v261 = vrot.slane %v260, 2
    %v262 = vadd.f32 %v260, %v261
    %v263 = vrot.slane %v262, 1
    %v264 = vadd.f32 %v262, %v263
    %s265 = vtos %v264
    %s266 = sadd.f32 %s254, %s265
    %v267 = vsel %vm244, %v211, 0.0
    %268 = vadd.xlane.f32.xlu0 %v267
    %v269 = vpop.xlane.xlu0 %268
    %v270 = vrot.slane %v269, 4
    %v271 = vadd.f32 %v269, %v270
    %v272 = vrot.slane %v271, 2
    %v273 = vadd.f32 %v271, %v272
    %v274 = vrot.slane %v273, 1
    %v275 = vadd.f32 %v273, %v274
    %s276 = vtos %v275
    %s277 = smul.f32 %s276, 2.0
    %s278 = ssub.f32 %s266, %s277
    %s279 = smul.f32 %s278, 0.0625
    %s280 = scalar_lea.smem [#allocation11], 0
    %281 = sst [smem:[%s280]] %s279
    // Predicated region
    $region46: #{tpu_custom_call.1} parent=1 // pred_check
      _
    $region47: #{tpu_custom_call.1} parent=1 // pred_check_branch
      %283 = sbr.rel (0) target = $region49
    $region48: #{tpu_custom_call.1} parent=1 // pred_region
      %285 = vsyncadd [#allocation5], 0
      %s287 = sshll.u32 %s7, 4
      %s288 = int_to_ptr.hbm [resolvable:$true] %s287
      %290 = dma.smem_to_hbm [#allocation11], 16, %s288, [#allocation5]
    $region49: #{tpu_custom_call.1} parent=1 // pred_fallthru
      _
    // Predicated region
    $region50: #{tpu_custom_call.1} parent=1 // pred_check
      _
    $region51: #{tpu_custom_call.1} parent=1 // pred_check_branch
      %292 = sbr.rel (0) target = $region53
    $region52: #{tpu_custom_call.1} parent=1 // pred_region
      %294 = dma.done [#allocation5], 16
    $region53: #{tpu_custom_call.1} parent=1 // pred_fallthru
      _
    %295 = sfence
    %296 = vsyncpa [#allocation4], 1
    %297 = vsyncpa [#allocation7], 1
    %298 = vsyncpa [#allocation10], 1
    %299 = vsyncpa [#allocation5], 1

</llo_original>
